<compile_context>
chip_gen: v5e
topology: v5e:2x2
jax: 0.10.0
libtpu: 0.0.40
codegen_flags: <defaults>
</compile_context>

<pallas_src>
import functools

import jax
import jax.numpy as jnp
from jax.experimental import pallas as pl
from jax.experimental.pallas import tpu as pltpu


# ------------------------------- Pallas kernel --------------------------------

def head_kernel(x_ref, w1_ref, b1_ref, w2_ref, b2_ref, o_ref, acc_ref, *,
                pooling_mode, seq_len):
    """Pooling + Linear->ReLU->Linear.

    x_ref : [TB, TS, H]  (TS = 8-token prefix for CLS, a seq tile for MEAN)
    w1    : [H,  FHp] bf16   b1 : [1, FHp] f32
    w2    : [FHp, Cp] bf16   b2 : [1, Cp ] f32
    o_ref : [TB, Cp] f32     (resident across the seq reduction axis)
    acc   : [TB, H ] f32     VMEM scratch holding the pooled accumulator
    """
    s = pl.program_id(1)

    @pl.when(s == 0)
    def _init():
        acc_ref[...] = jnp.zeros_like(acc_ref)

    x = x_ref[...].astype(jnp.float32)
    if pooling_mode == 'CLS':
        acc_ref[...] += x[:, 0, :]                 # single seq step, token 0
    elif pooling_mode == 'MEAN':
        acc_ref[...] += jnp.sum(x, axis=1)         # running sum over seq tiles
    else:
        raise Exception()

    @pl.when(s == pl.num_programs(1) - 1)
    def _finalize():
        pooled = acc_ref[...]
        if pooling_mode == 'MEAN':
            pooled = pooled * (1.0 / seq_len)      # divide by the TRUE seq len
        h = jnp.dot(pooled.astype(jnp.bfloat16), w1_ref[...],
                    preferred_element_type=jnp.float32) + b1_ref[...]
        h = jnp.maximum(h, 0.0)
        logits = jnp.dot(h.astype(jnp.bfloat16), w2_ref[...],
                         preferred_element_type=jnp.float32) + b2_ref[...]
        o_ref[...] = logits.astype(o_ref.dtype)


# ------------------------------- JAX wrapper -----------------------------------

def _round_up(n, m):
    return ((n + m - 1) // m) * m


def _pad2(a, rows, cols):
    return jnp.pad(a, ((0, rows - a.shape[0]), (0, cols - a.shape[1])))


_X_TILE_BUDGET_BYTES = 4 * 1024 * 1024   # per x buffer (x2 for double-buffering)


def _choose_batch_tile(Bp):
    for tb in (128, 64, 32, 16, 8):
        if Bp % tb == 0:
            return tb
    return Bp


def _choose_seq_tile(S, TB, H):
    """Largest seq tile (multiple of 8, <= round_up(S, 8)) fitting the VMEM budget."""
    s_cap = _round_up(S, 8)
    ts = 8
    for cand in (2048, 1024, 512, 256, 128, 64, 32, 16, 8):
        if cand <= s_cap and TB * cand * H * 4 <= _X_TILE_BUDGET_BYTES:
            ts = cand
            break
    return ts


def sequence_classification_head(x, params, pooling_mode):
    """x: [B, S, H] f32, params: {'w1','b1','w2','b2'} -> seq_score [B, C] f32."""
    B, S, H = x.shape
    w1, b1, w2, b2 = params['w1'], params['b1'], params['w2'], params['b2']
    FH, C = w2.shape
    FHp = _round_up(FH, 128)
    Cp = _round_up(C, 128)

    # Zero-pad FF / class dims to lane multiples (harmless: padded features are
    # ReLU(0)=0 and padded w2 rows are 0); cast MXU operands to bf16 once.
    w1p = _pad2(w1, H, FHp).astype(jnp.bfloat16)
    b1p = _pad2(b1.reshape(1, -1), 1, FHp).astype(jnp.float32)
    w2p = _pad2(w2, FHp, Cp).astype(jnp.bfloat16)
    b2p = _pad2(b2.reshape(1, -1), 1, Cp).astype(jnp.float32)

    # Pad batch to a sublane multiple (padded rows are sliced off afterwards).
    Bp = _round_up(B, 8)
    TB = _choose_batch_tile(Bp)

    if pooling_mode == 'CLS':
        TS = S if S < 8 else 8                     # sublane-aligned prefix only
        Sp = S
        x_map = lambda b, s: (b, 0, 0)
    elif pooling_mode == 'MEAN':
        TS = _choose_seq_tile(S, TB, H)
        Sp = _round_up(S, TS)                      # zero padding: sum unchanged
        x_map = lambda b, s: (b, s, 0)
    else:
        raise Exception()
    n_s = Sp // TS

    xp = x.astype(jnp.float32)
    if Bp != B or Sp != S:
        xp = jnp.pad(xp, ((0, Bp - B), (0, Sp - S), (0, 0)))

    const2 = lambda b, s: (0, 0)                   # weights: resident in VMEM
    kernel = functools.partial(head_kernel, pooling_mode=pooling_mode, seq_len=S)

    out = pl.pallas_call(
        kernel,
        out_shape=jax.ShapeDtypeStruct((Bp, Cp), jnp.float32),
        grid_spec=pltpu.PrefetchScalarGridSpec(
            num_scalar_prefetch=0,
            grid=(Bp // TB, n_s),
            in_specs=[
                pl.BlockSpec((TB, TS, H), x_map),
                pl.BlockSpec((H, FHp), const2),
                pl.BlockSpec((1, FHp), const2),
                pl.BlockSpec((FHp, Cp), const2),
                pl.BlockSpec((1, Cp), const2),
            ],
            out_specs=pl.BlockSpec((TB, Cp), lambda b, s: (b, 0)),
            scratch_shapes=[pltpu.VMEM((TB, H), jnp.float32)],
        ),
        compiler_params=pltpu.CompilerParams(
            dimension_semantics=("parallel", "arbitrary"),
            vmem_limit_bytes=32 * 1024 * 1024,
        ),
    )(xp, w1p, b1p, w2p, b2p)

    return out[:B, :C]                             # drop batch / lane padding


# ---------------------------- pure-JAX reference --------------------------------

def reference_head(x, params, pooling_mode):
    if pooling_mode == 'CLS':
        pooled = x[:, 0, :]
    elif pooling_mode == 'MEAN':
        pooled = x.mean(axis=1)
    else:
        raise Exception()
    h = jnp.maximum(pooled @ params['w1'] + params['b1'], 0.0)
    return h @ params['w2'] + params['b2']


# ------------------------------------ main ---------------------------------------

if __name__ == "__main__":
    config = {'pooling_mode': 'CLS', 'hidden_dim': 32, 'ff_dim': 64, 'num_classes': 4}
    B, S, H = 2, 8, config['hidden_dim']

    key = jax.random.PRNGKey(0)
    kx, k1, k2, k3, k4 = jax.random.split(key, 5)
    x = jax.random.normal(kx, (B, S, H), jnp.float32)
    params = {
        'w1': (0.05 * jax.random.normal(k1, (H, config['ff_dim']))).astype(jnp.float32),
        'b1': (0.01 * jax.random.normal(k2, (config['ff_dim'],))).astype(jnp.float32),
        'w2': (0.05 * jax.random.normal(k3, (config['ff_dim'], config['num_classes']))).astype(jnp.float32),
        'b2': (0.01 * jax.random.normal(k4, (config['num_classes'],))).astype(jnp.float32),
    }

    for mode in ('CLS', 'MEAN'):
        out = sequence_classification_head(x, params, mode)
        jax.block_until_ready(out)
        ref = reference_head(x, params, mode)
        assert out.shape == (B, config['num_classes'])
        assert jnp.allclose(out, ref, rtol=2e-2, atol=2e-3), (mode, out, ref)

    print("KERNEL_OK")
</pallas_src>

<mosaic_0001>
module attributes {stable_mosaic.version = 11 : i64} {
  func.func @head_kernel(%arg0: i32, %arg1: i32, %arg2: memref<8x8x32xf32, #tpu.memory_space<vmem>>, %arg3: memref<32x128xbf16, #tpu.memory_space<vmem>>, %arg4: memref<1x128xf32, #tpu.memory_space<vmem>>, %arg5: memref<128x128xbf16, #tpu.memory_space<vmem>>, %arg6: memref<1x128xf32, #tpu.memory_space<vmem>>, %arg7: memref<8x128xf32, #tpu.memory_space<vmem>>, %arg8: memref<8x32xf32, #tpu.memory_space<vmem>>) attributes {dimension_semantics = [#tpu.dimension_semantics<parallel>, #tpu.dimension_semantics<arbitrary>], iteration_bounds = array<i64: 1, 1>, scalar_prefetch = 0 : i64, scratch_operands = 1 : i64, tpu.core_type = #tpu.core_type<tc>, window_params = [{transform_indices = @transform_0, window_bounds = array<i64: 8, 8, 32>}, {pipeline_mode = #tpu.pipeline_mode<synchronous>, transform_indices = @transform_1, window_bounds = array<i64: 32, 128>}, {pipeline_mode = #tpu.pipeline_mode<synchronous>, transform_indices = @transform_2, window_bounds = array<i64: 1, 128>}, {pipeline_mode = #tpu.pipeline_mode<synchronous>, transform_indices = @transform_3, window_bounds = array<i64: 128, 128>}, {pipeline_mode = #tpu.pipeline_mode<synchronous>, transform_indices = @transform_4, window_bounds = array<i64: 1, 128>}, {transform_indices = @transform_5, window_bounds = array<i64: 8, 128>}]} {
    %c0_i32 = arith.constant 0 : i32
    %0 = arith.cmpi eq, %arg1, %c0_i32 : i32
    %1 = arith.extui %0 : i1 to i32
    %c0_i32_0 = arith.constant 0 : i32
    %2 = arith.cmpi ne, %1, %c0_i32_0 : i32
    scf.if %2 {
      %cst = arith.constant 0.000000e+00 : f32
      %12 = vector.broadcast %cst : f32 to vector<8x32xf32>
      %c0_9 = arith.constant 0 : index
      %c0_10 = arith.constant 0 : index
      %13 = vector.load %arg8[%c0_9, %c0_10] : memref<8x32xf32, #tpu.memory_space<vmem>>, vector<8x32xf32>
      tpu.vector_store %arg8[%c0_9, %c0_10], %12 {strides = array<i32>} : memref<8x32xf32, #tpu.memory_space<vmem>>, vector<8x32xf32>,
    } else {
    }
    %c0 = arith.constant 0 : index
    %c0_1 = arith.constant 0 : index
    %c0_2 = arith.constant 0 : index
    %3 = vector.load %arg2[%c0, %c0_1, %c0_2] : memref<8x8x32xf32, #tpu.memory_space<vmem>>, vector<8x8x32xf32>
    %c0_3 = arith.constant 0 : index
    %c0_4 = arith.constant 0 : index
    %4 = vector.load %arg8[%c0_3, %c0_4] : memref<8x32xf32, #tpu.memory_space<vmem>>, vector<8x32xf32>
    %5 = vector.extract_strided_slice %3 {offsets = [0, 0, 0], sizes = [8, 1, 32], strides = [1, 1, 1]} : vector<8x8x32xf32> to vector<8x1x32xf32>
    %6 = vector.shape_cast %5 : vector<8x1x32xf32> to vector<8x32xf32>
    %7 = arith.addf %4, %6 : vector<8x32xf32>
    %c0_5 = arith.constant 0 : index
    %c0_6 = arith.constant 0 : index
    %8 = vector.load %arg8[%c0_5, %c0_6] : memref<8x32xf32, #tpu.memory_space<vmem>>, vector<8x32xf32>
    tpu.vector_store %arg8[%c0_5, %c0_6], %7 {strides = array<i32>} : memref<8x32xf32, #tpu.memory_space<vmem>>, vector<8x32xf32>,
    %c0_i32_7 = arith.constant 0 : i32
    %9 = arith.cmpi eq, %arg1, %c0_i32_7 : i32
    %10 = arith.extui %9 : i1 to i32
    %c0_i32_8 = arith.constant 0 : i32
    %11 = arith.cmpi ne, %10, %c0_i32_8 : i32
    scf.if %11 {
      %c0_9 = arith.constant 0 : index
      %c0_10 = arith.constant 0 : index
      %12 = vector.load %arg8[%c0_9, %c0_10] : memref<8x32xf32, #tpu.memory_space<vmem>>, vector<8x32xf32>
      %13 = arith.truncf %12 : vector<8x32xf32> to vector<8x32xbf16>
      %c0_11 = arith.constant 0 : index
      %c0_12 = arith.constant 0 : index
      %14 = vector.load %arg3[%c0_11, %c0_12] : memref<32x128xbf16, #tpu.memory_space<vmem>>, vector<32x128xbf16>
      %cst = arith.constant dense<0.000000e+00> : vector<8x128xf32>
      %15 = tpu.matmul %13, %14, %cst {dimension_numbers = #tpu.dot_dimension_numbers<[1], [0], [0], [1], [0, 0, 1, 1], [], []>} : vector<8x32xbf16>, vector<32x128xbf16>, vector<8x128xf32> -> vector<8x128xf32>
      %c0_13 = arith.constant 0 : index
      %c0_14 = arith.constant 0 : index
      %16 = vector.load %arg4[%c0_13, %c0_14] : memref<1x128xf32, #tpu.memory_space<vmem>>, vector<1x128xf32>
      %17 = vector.broadcast %16 : vector<1x128xf32> to vector<8x128xf32>
      %18 = arith.addf %15, %17 : vector<8x128xf32>
      %cst_15 = arith.constant 0.000000e+00 : f32
      %19 = vector.broadcast %cst_15 : f32 to vector<8x128xf32>
      %20 = arith.maximumf %18, %19 : vector<8x128xf32>
      %21 = arith.truncf %20 : vector<8x128xf32> to vector<8x128xbf16>
      %c0_16 = arith.constant 0 : index
      %c0_17 = arith.constant 0 : index
      %22 = vector.load %arg5[%c0_16, %c0_17] : memref<128x128xbf16, #tpu.memory_space<vmem>>, vector<128x128xbf16>
      %cst_18 = arith.constant dense<0.000000e+00> : vector<8x128xf32>
      %23 = tpu.matmul %21, %22, %cst_18 {dimension_numbers = #tpu.dot_dimension_numbers<[1], [0], [0], [1], [0, 0, 1, 1], [], []>} : vector<8x128xbf16>, vector<128x128xbf16>, vector<8x128xf32> -> vector<8x128xf32>
      %c0_19 = arith.constant 0 : index
      %c0_20 = arith.constant 0 : index
      %24 = vector.load %arg6[%c0_19, %c0_20] : memref<1x128xf32, #tpu.memory_space<vmem>>, vector<1x128xf32>
      %25 = vector.broadcast %24 : vector<1x128xf32> to vector<8x128xf32>
      %26 = arith.addf %23, %25 : vector<8x128xf32>
      %c0_21 = arith.constant 0 : index
      %c0_22 = arith.constant 0 : index
      %27 = vector.load %arg7[%c0_21, %c0_22] : memref<8x128xf32, #tpu.memory_space<vmem>>, vector<8x128xf32>
      tpu.vector_store %arg7[%c0_21, %c0_22], %26 {strides = array<i32>} : memref<8x128xf32, #tpu.memory_space<vmem>>, vector<8x128xf32>,
    } else {
    }
    return
  }
  func.func @transform_0(%arg0: i32, %arg1: i32) -> (i32, i32, i32) {
    %c0_i32 = arith.constant 0 : i32
    %c0_i32_0 = arith.constant 0 : i32
    %c0_i32_1 = arith.constant 0 : i32
    return %arg0, %c0_i32, %c0_i32_0 : i32, i32, i32
  }
  func.func @transform_1(%arg0: i32, %arg1: i32) -> (i32, i32) {
    %c0_i32 = arith.constant 0 : i32
    %c0_i32_0 = arith.constant 0 : i32
    %c0_i32_1 = arith.constant 0 : i32
    return %c0_i32, %c0_i32_0 : i32, i32
  }
  func.func @transform_2(%arg0: i32, %arg1: i32) -> (i32, i32) {
    %c0_i32 = arith.constant 0 : i32
    %c0_i32_0 = arith.constant 0 : i32
    %c0_i32_1 = arith.constant 0 : i32
    return %c0_i32, %c0_i32_0 : i32, i32
  }
  func.func @transform_3(%arg0: i32, %arg1: i32) -> (i32, i32) {
    %c0_i32 = arith.constant 0 : i32
    %c0_i32_0 = arith.constant 0 : i32
    %c0_i32_1 = arith.constant 0 : i32
    return %c0_i32, %c0_i32_0 : i32, i32
  }
  func.func @transform_4(%arg0: i32, %arg1: i32) -> (i32, i32) {
    %c0_i32 = arith.constant 0 : i32
    %c0_i32_0 = arith.constant 0 : i32
    %c0_i32_1 = arith.constant 0 : i32
    return %c0_i32, %c0_i32_0 : i32, i32
  }
  func.func @transform_5(%arg0: i32, %arg1: i32) -> (i32, i32) {
    %c0_i32 = arith.constant 0 : i32
    %c0_i32_0 = arith.constant 0 : i32
    return %arg0, %c0_i32 : i32, i32
  }
}

</mosaic_0001>

<llo_original>
// kernel: tpu_custom_call.1
$region0: #{tpu_custom_call.1}
  #allocation0 [shape = 'u32[]', space=smem, size = 0x4, offset = 0x4, fixed_abs, tag = 'smem constant byte address 0x4 - core index']
  #allocation1 [shape = 'u32[72,128]{1,0:T(1,128)}', space=vmem, size = 0x9000, scoped, tag = 'internal scratch']
  #allocation2 [shape = 'f32[8,32]{1,0:T(8,128)}', space=vmem, size = 0x1000, scoped, tag = 'scratch operand']
  %s0 = inlined_call_operand.hbm [shape: f32[8,8,32], index: 0, kind: input, shape index: {}]
  %s1 = inlined_call_operand.hbm [shape: bf16[32,128], index: 1, kind: input, shape index: {}]
  %s2 = inlined_call_operand.vmem [shape: f32[1,128], index: 2, kind: input, shape index: {}]
  %s3 = inlined_call_operand.hbm [shape: bf16[128,128], index: 3, kind: input, shape index: {}]
  %s4 = inlined_call_operand.vmem [shape: f32[1,128], index: 4, kind: input, shape index: {}]
  %s5 = inlined_call_operand.hbm [shape: f32[8,128], index: 5, kind: output, shape index: {}]
  %s6 = sld [smem:[#allocation0]]
  $region50: #{tpu_custom_call.1} parent=0
    _
  %s8 = ssub.s32 1, %s6
  %s9 = scalar_select 0, %s8, %s6
  $region1: #{tpu_custom_call.1} parent=0
    #allocation3 [shape = 'u8[32768]{0}', space=vmem, size = 0x8000, scoped, tag = 'input window, operand 0, single buffered']
    #allocation4 [shape = 's32[1]{0}', space=sflag, size = 0x4, scoped, tag = 'scoped memory for tpu_custom_call.1']
    #allocation5 [shape = 's32[1]{0}', space=sflag, size = 0x4, scoped, tag = 'scoped memory for tpu_custom_call.1']
    #allocation6 [shape = 'u8[8192]{0}', space=vmem, size = 0x2000, scoped, tag = 'input window, operand 1, single buffered']
    #allocation7 [shape = 's32[1]{0}', space=sflag, size = 0x4, scoped, tag = 'scoped memory for tpu_custom_call.1']
    #allocation8 [shape = 'u8[32768]{0}', space=vmem, size = 0x8000, scoped, tag = 'input window, operand 3, single buffered']
    #allocation9 [shape = 'u8[4096]{0}', space=vmem, size = 0x1000, scoped, tag = 'output window, operand 0, single buffered']
    %10 = vsyncpa [#allocation4], 0
    %11 = vsyncpa [#allocation7], 0
    %12 = vsyncpa [#allocation5], 0
    // Predicated region
    $region2: #{tpu_custom_call.1} parent=1 // pred_check
      _
    $region3: #{tpu_custom_call.1} parent=1 // pred_check_branch
      %14 = sbr.rel (0) target = $region5
    $region4: #{tpu_custom_call.1} parent=1 // pred_region
      %16 = vsyncadd [#allocation4], 0
      %s17 = sshll.u32 %s0, 4
      %s18 = int_to_ptr.hbm [resolvable:$true] %s17
      %s19 = sshll.u32 [#allocation3], 4
      %s20 = int_to_ptr.vmem [resolvable:$true] %s19
      %25 = dma.hbm_to_vmem [thread:$0]  %s18, 1024, %s20, [#allocation4], 128, 128, 8
    $region5: #{tpu_custom_call.1} parent=1 // pred_fallthru
      _
    // Predicated region
    $region6: #{tpu_custom_call.1} parent=1 // pred_check
      _
    $region7: #{tpu_custom_call.1} parent=1 // pred_check_branch
      %27 = sbr.rel (0) target = $region9
    $region8: #{tpu_custom_call.1} parent=1 // pred_region
      %29 = vsyncadd [#allocation7], 0
      %s30 = sshll.u32 %s1, 4
      %s31 = int_to_ptr.hbm [resolvable:$true] %s30
      %s32 = sshll.u32 [#allocation6], 4
      %s33 = int_to_ptr.vmem [resolvable:$true] %s32
      %38 = dma.hbm_to_vmem [thread:$0]  %s31, 256, %s33, [#allocation7], 64, 64, 4
    $region9: #{tpu_custom_call.1} parent=1 // pred_fallthru
      _
    // Predicated region
    $region10: #{tpu_custom_call.1} parent=1 // pred_check
      _
    $region11: #{tpu_custom_call.1} parent=1 // pred_check_branch
      %40 = sbr.rel (0) target = $region13
    $region12: #{tpu_custom_call.1} parent=1 // pred_region
      _
    $region13: #{tpu_custom_call.1} parent=1 // pred_fallthru
      _
    // Predicated region
    $region14: #{tpu_custom_call.1} parent=1 // pred_check
      _
    $region15: #{tpu_custom_call.1} parent=1 // pred_check_branch
      %42 = sbr.rel (0) target = $region17
    $region16: #{tpu_custom_call.1} parent=1 // pred_region
      %44 = vsyncadd [#allocation7], 0
      %s45 = sshll.u32 %s3, 4
      %s46 = int_to_ptr.hbm [resolvable:$true] %s45
      %s47 = sshll.u32 [#allocation8], 4
      %s48 = int_to_ptr.vmem [resolvable:$true] %s47
      %53 = dma.hbm_to_vmem [thread:$0]  %s46, 1024, %s48, [#allocation7], 64, 64, 4
    $region17: #{tpu_custom_call.1} parent=1 // pred_fallthru
      _
    // Predicated region
    $region18: #{tpu_custom_call.1} parent=1 // pred_check
      _
    $region19: #{tpu_custom_call.1} parent=1 // pred_check_branch
      %55 = sbr.rel (0) target = $region21
    $region20: #{tpu_custom_call.1} parent=1 // pred_region
      _
    $region21: #{tpu_custom_call.1} parent=1 // pred_fallthru
      _
    // Predicated region
    $region22: #{tpu_custom_call.1} parent=1 // pred_check
      _
    $region23: #{tpu_custom_call.1} parent=1 // pred_check_branch
      %57 = sbr.rel (0) target = $region25
    $region24: #{tpu_custom_call.1} parent=1 // pred_region
      %59 = dma.done [#allocation4], 1024
    $region25: #{tpu_custom_call.1} parent=1 // pred_fallthru
      _
    // Predicated region
    $region26: #{tpu_custom_call.1} parent=1 // pred_check
      _
    $region27: #{tpu_custom_call.1} parent=1 // pred_check_branch
      %61 = sbr.rel (0) target = $region29
    $region28: #{tpu_custom_call.1} parent=1 // pred_region
      %63 = dma.done [#allocation7], 256
    $region29: #{tpu_custom_call.1} parent=1 // pred_fallthru
      _
    // Predicated region
    $region30: #{tpu_custom_call.1} parent=1 // pred_check
      _
    $region31: #{tpu_custom_call.1} parent=1 // pred_check_branch
      %65 = sbr.rel (0) target = $region33
    $region32: #{tpu_custom_call.1} parent=1 // pred_region
      %67 = dma.done [#allocation7], 1024
    $region33: #{tpu_custom_call.1} parent=1 // pred_fallthru
      _
    %p69 = scmp.eq.s32.totalorder 0, 0
    // Predicated region
    $region34: #{tpu_custom_call.1} parent=1 // pred_check
      %p70 = pneg %p69
    $region35: #{tpu_custom_call.1} parent=1 // pred_check_branch
      %72 = sbr.rel (%p70) target = $region37
    $region36: #{tpu_custom_call.1} parent=1 // pred_region
      %vm73 = vcmask 261120
      %74 = vst.msk [vmem:[#allocation2] sm:$0xff] %vm73, 0.0
    $region37: #{tpu_custom_call.1} parent=1 // pred_fallthru
      _
    %v75 = vld [vmem:[#allocation3] sm:$0xff]
    %v76 = vld [vmem:[#allocation3 + $0x8] sm:$0xff]
    %v77 = vld [vmem:[#allocation3 + $0x10] sm:$0xff]
    %v78 = vld [vmem:[#allocation3 + $0x18] sm:$0xff]
    %v79 = vld [vmem:[#allocation3 + $0x20] sm:$0xff]
    %v80 = vld [vmem:[#allocation3 + $0x28] sm:$0xff]
    %v81 = vld [vmem:[#allocation3 + $0x30] sm:$0xff]
    %v82 = vld [vmem:[#allocation3 + $0x38] sm:$0xff]
    %v83 = vld [vmem:[#allocation2] sm:$0xff]
    %v92 = vrot.slane %v76, 7
    %vm93 = vcmask 1041409
    %v94 = vsel %vm93, %v92, %v75
    %v95 = vrot.slane %v77, 6
    %vm96 = vcmask 1042434
    %v97 = vsel %vm96, %v95, %v94
    %v98 = vrot.slane %v78, 5
    %vm99 = vcmask 1043459
    %v100 = vsel %vm99, %v98, %v97
    %v101 = vrot.slane %v79, 4
    %vm102 = vcmask 1044484
    %v103 = vsel %vm102, %v101, %v100
    %v104 = vrot.slane %v80, 3
    %vm105 = vcmask 1045509
    %v106 = vsel %vm105, %v104, %v103
    %v107 = vrot.slane %v81, 2
    %vm108 = vcmask 1046534
    %v109 = vsel %vm108, %v107, %v106
    %v110 = vrot.slane %v82, 1
    %vm111 = vcmask 1047559
    %v112 = vsel %vm111, %v110, %v109
    %v114 = vadd.f32 %v83, %v112
    %vm115 = vcmask 261120
    %116 = vst.msk [vmem:[#allocation2] sm:$0xff] %vm115, %v114
    // Predicated region
    $region38: #{tpu_custom_call.1} parent=1 // pred_check
      %p117 = pneg %p69
    $region39: #{tpu_custom_call.1} parent=1 // pred_check_branch
      %119 = sbr.rel (%p117) target = $region41
    $region40: #{tpu_custom_call.1} parent=1 // pred_region
      %v120 = vld [vmem:[#allocation2] sm:$0xff]
      %v121 = vpack.c.bf16 %v120, %v120
      %v122 = vld [vmem:[#allocation6] sm:$0xf]
      %v123 = vld [vmem:[#allocation6 + $0x4] sm:$0xf]
      %v124 = vld [vmem:[#allocation6 + $0x8] sm:$0xf]
      %v125 = vld [vmem:[#allocation6 + $0xc] sm:$0xf]
      %v126 = vld [vmem:[%s2] sm:$0x1]
      %v128 = vperm.slane %v126, 0
      %v134 = vunpack.c.l.b16 %v122
      %v135 = vunpack.c.l.b16 %v123
      %v136 = vunpack.c.l.b16 %v124
      %v137 = vunpack.c.l.b16 %v125
      %v138 = vpack.c.b16 %v135, %v134
      %v139 = vpack.c.b16 %v137, %v136
      %v143 = vsel %vm115, %v121, 0
      %145 = vmatpush.bf16.msra.mxu0 0
      %146 = vmatpush.bf16.msra.mxu0 0
      %147 = vmatpush.bf16.msra.mxu0 0
      %148 = vmatpush.bf16.msra.mxu0 0
      %149 = vmatpush.bf16.msra.mxu0 0
      %150 = vmatpush.bf16.msra.mxu0 0
      %151 = vmatpush.bf16.msra.mxu0 %v139
      %152 = vmatpush.bf16.msra.mxu0 %v138
      %153 = vmatmul.bf16.gmra.mxu0 %v143
      %v154 = vpop.f32.mrf.mxu0
      %v155 = vadd.f32 %v128, %v154
      %v156 = vpop.f32.mrf.mxu0
      %157 = vdwg.mxu0
      %v158 = vmax.f32 %v155, 0.0
      %v159 = vpack.c.bf16 %v158, %v158
      %v160 = vld [vmem:[#allocation8] sm:$0xf]
      %v161 = vld [vmem:[#allocation8 + $0x4] sm:$0xf]
      %v162 = vld [vmem:[#allocation8 + $0x8] sm:$0xf]
      %v163 = vld [vmem:[#allocation8 + $0xc] sm:$0xf]
      %v164 = vld [vmem:[#allocation8 + $0x10] sm:$0xf]
      %v165 = vld [vmem:[#allocation8 + $0x14] sm:$0xf]
      %v166 = vld [vmem:[#allocation8 + $0x18] sm:$0xf]
      %v167 = vld [vmem:[#allocation8 + $0x1c] sm:$0xf]
      %v168 = vld [vmem:[#allocation8 + $0x20] sm:$0xf]
      %v169 = vld [vmem:[#allocation8 + $0x24] sm:$0xf]
      %v170 = vld [vmem:[#allocation8 + $0x28] sm:$0xf]
      %v171 = vld [vmem:[#allocation8 + $0x2c] sm:$0xf]
      %v172 = vld [vmem:[#allocation8 + $0x30] sm:$0xf]
      %v173 = vld [vmem:[#allocation8 + $0x34] sm:$0xf]
      %v174 = vld [vmem:[#allocation8 + $0x38] sm:$0xf]
      %v175 = vld [vmem:[#allocation8 + $0x3c] sm:$0xf]
      %v176 = vld [vmem:[%s4] sm:$0x1]
      %v178 = vperm.slane %v176, 0
      %v196 = vunpack.c.l.b16 %v160
      %v197 = vunpack.c.l.b16 %v161
      %v198 = vunpack.c.l.b16 %v162
      %v199 = vunpack.c.l.b16 %v163
      %v200 = vunpack.c.l.b16 %v164
      %v201 = vunpack.c.l.b16 %v165
      %v202 = vunpack.c.l.b16 %v166
      %v203 = vunpack.c.l.b16 %v167
      %v204 = vunpack.c.l.b16 %v168
      %v205 = vunpack.c.l.b16 %v169
      %v206 = vunpack.c.l.b16 %v170
      %v207 = vunpack.c.l.b16 %v171
      %v208 = vunpack.c.l.b16 %v172
      %v209 = vunpack.c.l.b16 %v173
      %v210 = vunpack.c.l.b16 %v174
      %v211 = vunpack.c.l.b16 %v175
      %v212 = vpack.c.b16 %v197, %v196
      %v213 = vpack.c.b16 %v199, %v198
      %v214 = vpack.c.b16 %v201, %v200
      %v215 = vpack.c.b16 %v203, %v202
      %v216 = vpack.c.b16 %v205, %v204
      %v217 = vpack.c.b16 %v207, %v206
      %v218 = vpack.c.b16 %v209, %v208
      %v219 = vpack.c.b16 %v211, %v210
      %228 = vmatpush.bf16.msra.mxu0 %v219
      %229 = vmatpush.bf16.msra.mxu0 %v218
      %230 = vmatpush.bf16.msra.mxu0 %v217
      %231 = vmatpush.bf16.msra.mxu0 %v216
      %232 = vmatpush.bf16.msra.mxu0 %v215
      %233 = vmatpush.bf16.msra.mxu0 %v214
      %234 = vmatpush.bf16.msra.mxu0 %v213
      %235 = vmatpush.bf16.msra.mxu0 %v212
      %236 = vmatmul.bf16.gmra.mxu0 %v159
      %v237 = vpop.f32.mrf.mxu0
      %v238 = vadd.f32 %v178, %v237
      %v239 = vpop.f32.mrf.mxu0
      %240 = vdwg.mxu0
      %241 = vst [vmem:[#allocation9] sm:$0xff] %v238
    $region41: #{tpu_custom_call.1} parent=1 // pred_fallthru
      _
    // Predicated region
    $region42: #{tpu_custom_call.1} parent=1 // pred_check
      _
    $region43: #{tpu_custom_call.1} parent=1 // pred_check_branch
      %243 = sbr.rel (0) target = $region45
    $region44: #{tpu_custom_call.1} parent=1 // pred_region
      %245 = vsyncadd [#allocation5], 0
      %s247 = sshll.u32 [#allocation9], 4
      %s248 = int_to_ptr.vmem [resolvable:$true] %s247
      %s249 = sshll.u32 %s5, 4
      %s250 = int_to_ptr.hbm [resolvable:$true] %s249
      %252 = dma.vmem_to_hbm [thread:$0]  %s248, 128, %s250, [#allocation5]
    $region45: #{tpu_custom_call.1} parent=1 // pred_fallthru
      _
    // Predicated region
    $region46: #{tpu_custom_call.1} parent=1 // pred_check
      _
    $region47: #{tpu_custom_call.1} parent=1 // pred_check_branch
      %254 = sbr.rel (0) target = $region49
    $region48: #{tpu_custom_call.1} parent=1 // pred_region
      %256 = dma.done [#allocation5], 128
    $region49: #{tpu_custom_call.1} parent=1 // pred_fallthru
      _
    %257 = vsyncpa [#allocation4], 1
    %258 = vsyncpa [#allocation7], 1
    %259 = vsyncpa [#allocation5], 1

</llo_original>
